<compile_context>
chip_gen: v7x
topology: tpu7x:2x2x1
jax: 0.10.0
libtpu: 0.0.40
codegen_flags: <defaults>
</compile_context>

<pallas_src>
import functools

import jax
import jax.numpy as jnp
from jax.experimental import pallas as pl
from jax.experimental.pallas import tpu as pltpu

LANES = 128
SUBLANES = 8
MAX_TILE_ROWS = 8192          # 8192*128*4B = 4 MiB per f32 input buffer
CHUNK_TARGET_ROWS = 128       # rows reduced per fori_loop iteration
MAX_CORES = 2                 # v7x has 2 TensorCores per chip
NEUTRAL_LOGIT = -1e4          # sigmoid -> 0, softplus -> 0: contributes nothing
VMEM_LIMIT_BYTES = 32 * 1024 * 1024


def _round_up(a, b):
    return (a + b - 1) // b * b


def _pick_chunk_rows(tile_rows):
    """Largest multiple of SUBLANES dividing tile_rows, <= CHUNK_TARGET_ROWS."""
    best = SUBLANES
    c = SUBLANES
    limit = min(tile_rows, CHUNK_TARGET_ROWS)
    while c <= limit:
        if tile_rows % c == 0:
            best = c
        c += SUBLANES
    return best


def _num_tensorcores():
    """Best-effort TensorCores-per-chip (2 on v7x, 1 on v5e/v6e)."""
    try:
        dev = jax.devices()[0]
    except Exception:
        return 1
    for attr in ("num_cores", "core_count", "num_cores_per_chip"):
        val = getattr(dev, attr, None)
        if isinstance(val, int) and val > 0:
            return min(val, MAX_CORES)
    return 1


def _partial_sums(x_ref, t_ref, *, tile_rows, chunk_rows, masked,
                  block_start=None, valid_rows=None):
    """Stream the tile in chunk_rows-row chunks; return four (8,128) partials.

    All per-step reductions are vreg adds (leading-axis sums of (n,8,128)
    views); the cross-lane reduction happens only once, in the final flush.
    """
    n_chunks = tile_rows // chunk_rows
    pow2_chunk = (chunk_rows & (chunk_rows - 1)) == 0

    def body(k, carry):
        a_pt, a_p, a_t, a_bce = carry
        r0 = k * chunk_rows
        if pow2_chunk:
            r0 = pl.multiple_of(r0, chunk_rows)
        x = x_ref[pl.ds(r0, chunk_rows), :].astype(jnp.float32)
        t = t_ref[pl.ds(r0, chunk_rows), :].astype(jnp.float32)
        if masked:
            rid = (block_start + r0) + jax.lax.broadcasted_iota(
                jnp.int32, (chunk_rows, LANES), 0)
            valid = rid < valid_rows
            x = jnp.where(valid, x, NEUTRAL_LOGIT)
            t = jnp.where(valid, t, 0.0)

        # sigmoid + BCE straight from logits; exp/log land on the EUP slot and
        # there is no vector divide:
        #   softplus(-x) = relu(x) - x + log(1 + exp(-|x|)) = -log(sigmoid(x))
        e = jnp.exp(-jnp.abs(x))
        lg = jnp.log(1.0 + e)
        relu_x = jnp.maximum(x, 0.0)
        sp_neg_raw = (relu_x - x) + lg            # -log(sigmoid(x)), exact
        p = jnp.exp(-sp_neg_raw)                  # sigmoid(x), divide-free
        # PyTorch binary_cross_entropy clamps log(p), log(1-p) at -100:
        sp_pos = jnp.minimum(relu_x + lg, 100.0)  # = -max(log(1-p), -100)
        sp_neg = jnp.minimum(sp_neg_raw, 100.0)   # = -max(log(p),   -100)
        bce = sp_pos + t * (sp_neg - sp_pos)      # (1-t)*sp_pos + t*sp_neg

        def csum(v):  # (chunk_rows,128) -> (8,128): pure vreg adds
            return jnp.sum(
                v.reshape(chunk_rows // SUBLANES, SUBLANES, LANES), axis=0)

        return (a_pt + csum(p * t), a_p + csum(p),
                a_t + csum(t), a_bce + csum(bce))

    zeros = jnp.zeros((SUBLANES, LANES), jnp.float32)
    return jax.lax.fori_loop(0, n_chunks, body, (zeros, zeros, zeros, zeros))


def _combo_sums_kernel(x_ref, t_ref, out_ref, acc_ref, *,
                       tile_rows, chunk_rows, valid_rows, steps_per_core,
                       emit_masked):
    """Accumulates (8,128) partials of [p*t, p, t, bce] in VMEM scratch.

    out_ref (SMEM, f32[1, 4]): this core's four totals, written on last step.
    """
    c = pl.program_id(0)          # TensorCore split ("parallel")
    i = pl.program_id(1)          # streaming step ("arbitrary")

    @pl.when(i == 0)
    def _init():
        acc_ref[...] = jnp.zeros_like(acc_ref)

    step = c * steps_per_core + i
    block_start = step * tile_rows

    def accumulate(parts):
        a_pt, a_p, a_t, a_bce = parts
        acc_ref[0] += a_pt
        acc_ref[1] += a_p
        acc_ref[2] += a_t
        acc_ref[3] += a_bce

    if emit_masked:
        needs_mask = block_start + tile_rows > valid_rows

        @pl.when(jnp.logical_not(needs_mask))
        def _full():
            accumulate(_partial_sums(
                x_ref, t_ref, tile_rows=tile_rows, chunk_rows=chunk_rows,
                masked=False))

        @pl.when(needs_mask)
        def _ragged():
            accumulate(_partial_sums(
                x_ref, t_ref, tile_rows=tile_rows, chunk_rows=chunk_rows,
                masked=True, block_start=block_start, valid_rows=valid_rows))
    else:
        accumulate(_partial_sums(
            x_ref, t_ref, tile_rows=tile_rows, chunk_rows=chunk_rows,
            masked=False))

    # Cross-lane reductions + scalar SMEM writes happen only once, at the end.
    @pl.when(i == pl.num_programs(1) - 1)
    def _flush():
        out_ref[0, 0] = jnp.sum(acc_ref[0])
        out_ref[0, 1] = jnp.sum(acc_ref[1])
        out_ref[0, 2] = jnp.sum(acc_ref[2])
        out_ref[0, 3] = jnp.sum(acc_ref[3])


def _compute_sums(inputs, targets):
    x_flat = inputs.reshape(-1)
    t_flat = targets.reshape(-1)

    if not jnp.issubdtype(x_flat.dtype, jnp.floating):
        x_flat = x_flat.astype(jnp.float32)
    if not jnp.issubdtype(t_flat.dtype, jnp.floating):
        t_flat = t_flat.astype(jnp.float32)

    n = x_flat.shape[0]
    rem = n % LANES
    if rem:
        # TODO(synk): ragged sizes still pay an O(N) neutral-pad copy; the
        # zero-copy alternative needs 1-D blocks (layout risk on Mosaic), so
        # the safe pad path is kept for the <128-element remainder case.
        pad = LANES - rem
        x_flat = jnp.concatenate(
            [x_flat, jnp.full((pad,), NEUTRAL_LOGIT, x_flat.dtype)])
        t_flat = jnp.concatenate([t_flat, jnp.zeros((pad,), t_flat.dtype)])

    rows = x_flat.shape[0] // LANES
    x2 = x_flat.reshape(rows, LANES)
    t2 = t_flat.reshape(rows, LANES)

    # Sub-32-bit inputs pack sublanes: align block rows to the packed tile of
    # the narrowest streamed dtype (8 for f32, 16 for bf16, ...).
    pack = max(4 // x2.dtype.itemsize, 4 // t2.dtype.itemsize, 1)
    row_align = SUBLANES * pack
    tile_rows = min(MAX_TILE_ROWS, _round_up(rows, row_align))
    chunk_rows = _pick_chunk_rows(tile_rows)

    nblocks = pl.cdiv(rows, tile_rows)
    num_cores = max(1, min(_num_tensorcores(), nblocks))
    steps = pl.cdiv(nblocks, num_cores)
    # Only emit the masked code path if some block can be ragged/duplicated.
    emit_masked = (rows % tile_rows != 0) or (num_cores * steps != nblocks)

    def in_map(c, i):
        # Clamp so a core's trailing (empty) steps re-read the final block;
        # those rows are fully masked out in-kernel.
        return (jnp.minimum(c * steps + i, nblocks - 1), 0)

    kernel = functools.partial(
        _combo_sums_kernel,
        tile_rows=tile_rows, chunk_rows=chunk_rows, valid_rows=rows,
        steps_per_core=steps, emit_masked=emit_masked)

    tile_spec = pl.BlockSpec((tile_rows, LANES), in_map)

    per_core = pl.pallas_call(
        kernel,
        out_shape=jax.ShapeDtypeStruct((num_cores, 4), jnp.float32),
        grid_spec=pltpu.PrefetchScalarGridSpec(
            num_scalar_prefetch=0,
            grid=(num_cores, steps),
            in_specs=[tile_spec, tile_spec],
            out_specs=pl.BlockSpec(
                (1, 4), lambda c, i: (c, 0),
                memory_space=pltpu.MemorySpace.SMEM),
            scratch_shapes=[pltpu.VMEM((4, SUBLANES, LANES), jnp.float32)],
        ),
        compiler_params=pltpu.CompilerParams(
            dimension_semantics=("parallel", "arbitrary"),
            vmem_limit_bytes=VMEM_LIMIT_BYTES),
    )(x2, t2)

    return jnp.sum(per_core, axis=0), n


def combo_loss(inputs, targets, alpha=0.8, gamma=2, smooth=1):
    """JAX/Pallas equivalent of ComboLoss.forward."""
    sums, n = _compute_sums(inputs, targets)
    intersection, sum_p, sum_t, sum_bce = sums[0], sums[1], sums[2], sums[3]

    dice_loss = 1.0 - (2.0 * intersection + smooth) / (sum_p + sum_t + smooth)
    bce = sum_bce / n
    bce_exp = jnp.exp(-bce)
    focal_loss = alpha * (1.0 - bce_exp) ** gamma * bce
    return bce + dice_loss + focal_loss


def _reference(inputs, targets, alpha=0.8, gamma=2, smooth=1):
    p = jax.nn.sigmoid(inputs).reshape(-1).astype(jnp.float32)
    t = targets.reshape(-1).astype(jnp.float32)
    intersection = jnp.sum(p * t)
    dice_loss = 1.0 - (2.0 * intersection + smooth) / (jnp.sum(p) + jnp.sum(t) + smooth)
    bce = jnp.mean(-(t * jnp.maximum(jnp.log(p), -100.0)
                     + (1.0 - t) * jnp.maximum(jnp.log(1.0 - p), -100.0)))
    bce_exp = jnp.exp(-bce)
    focal = alpha * (1.0 - bce_exp) ** gamma * bce
    return bce + dice_loss + focal


if __name__ == "__main__":
    key = jax.random.PRNGKey(0)
    k1, k2, k3, k4 = jax.random.split(key, 4)

    # Case 1: NCHW-like logits and binary targets (lane-aligned size,
    # unmasked fast path).
    x = jax.random.normal(k1, (2, 4, 16, 16), dtype=jnp.float32)
    t = (jax.random.uniform(k2, (2, 4, 16, 16)) > 0.5).astype(jnp.float32)

    loss = jax.block_until_ready(combo_loss(x, t))
    ref = _reference(x, t)
    assert jnp.allclose(loss, ref, rtol=1e-5, atol=1e-5), (loss, ref)

    # Case 2: ragged size (exercises the neutral tail pad + masked block path).
    x2 = jax.random.normal(k3, (3, 3, 17, 19), dtype=jnp.float32)
    t2 = (jax.random.uniform(k4, (3, 3, 17, 19)) > 0.5).astype(jnp.float32)

    loss2 = jax.block_until_ready(combo_loss(x2, t2))
    ref2 = _reference(x2, t2)
    assert jnp.allclose(loss2, ref2, rtol=1e-5, atol=1e-5), (loss2, ref2)

    print("KERNEL_OK")
</pallas_src>

<mosaic_0001>
module attributes {stable_mosaic.version = 11 : i64} {
  func.func @_combo_sums_kernel(%arg0: i32, %arg1: i32, %arg2: memref<16x128xf32, #tpu.memory_space<vmem>>, %arg3: memref<16x128xf32, #tpu.memory_space<vmem>>, %arg4: memref<1x4xf32, #tpu.memory_space<smem>>, %arg5: memref<4x8x128xf32, #tpu.memory_space<vmem>>) attributes {dimension_semantics = [#tpu.dimension_semantics<parallel>, #tpu.dimension_semantics<arbitrary>], iteration_bounds = array<i64: 1, 1>, scalar_prefetch = 0 : i64, scratch_operands = 1 : i64, tpu.core_type = #tpu.core_type<tc>, window_params = [{transform_indices = @transform_0, window_bounds = array<i64: 16, 128>}, {transform_indices = @transform_1, window_bounds = array<i64: 16, 128>}, {transform_indices = @transform_2, window_bounds = array<i64: 1, 4>}]} {
    %c0_i32 = arith.constant 0 : i32
    %0 = arith.cmpi eq, %arg1, %c0_i32 : i32
    %1 = arith.extui %0 : i1 to i32
    %c0_i32_0 = arith.constant 0 : i32
    %2 = arith.cmpi ne, %1, %c0_i32_0 : i32
    scf.if %2 {
      %cst_36 = arith.constant 0.000000e+00 : f32
      %72 = vector.broadcast %cst_36 : f32 to vector<4x8x128xf32>
      %c0_37 = arith.constant 0 : index
      %c0_38 = arith.constant 0 : index
      %c0_39 = arith.constant 0 : index
      %73 = vector.load %arg5[%c0_37, %c0_38, %c0_39] : memref<4x8x128xf32, #tpu.memory_space<vmem>>, vector<4x8x128xf32>
      tpu.vector_store %arg5[%c0_37, %c0_38, %c0_39], %72 {strides = array<i32>} : memref<4x8x128xf32, #tpu.memory_space<vmem>>, vector<4x8x128xf32>,
    } else {
    }
    %cst = arith.constant 0.000000e+00 : f32
    %3 = vector.broadcast %cst : f32 to vector<8x128xf32>
    %c0_i32_1 = arith.constant 0 : i32
    %c16_i32 = arith.constant 16 : i32
    %4 = arith.muli %c0_i32_1, %c16_i32 : i32
    %5 = tpu.assume_multiple %4, 16 : i32
    %6 = arith.index_cast %5 : i32 to index
    %c0 = arith.constant 0 : index
    %7 = vector.load %arg2[%6, %c0] : memref<16x128xf32, #tpu.memory_space<vmem>>, vector<16x128xf32>
    %8 = arith.index_cast %5 : i32 to index
    %c0_2 = arith.constant 0 : index
    %9 = vector.load %arg3[%8, %c0_2] : memref<16x128xf32, #tpu.memory_space<vmem>>, vector<16x128xf32>
    %10 = math.absf %7 : vector<16x128xf32>
    %cst_3 = arith.constant 0.000000e+00 : f32
    %11 = vector.broadcast %cst_3 : f32 to vector<16x128xf32>
    %12 = arith.subf %11, %10 : vector<16x128xf32>
    %13 = math.exp %12 : vector<16x128xf32>
    %cst_4 = arith.constant 1.000000e+00 : f32
    %14 = vector.broadcast %cst_4 : f32 to vector<16x128xf32>
    %15 = arith.addf %14, %13 : vector<16x128xf32>
    %16 = math.log %15 : vector<16x128xf32>
    %cst_5 = arith.constant 0.000000e+00 : f32
    %17 = vector.broadcast %cst_5 : f32 to vector<16x128xf32>
    %18 = arith.maximumf %7, %17 : vector<16x128xf32>
    %19 = arith.subf %18, %7 : vector<16x128xf32>
    %20 = arith.addf %19, %16 : vector<16x128xf32>
    %cst_6 = arith.constant 0.000000e+00 : f32
    %21 = vector.broadcast %cst_6 : f32 to vector<16x128xf32>
    %22 = arith.subf %21, %20 : vector<16x128xf32>
    %23 = math.exp %22 : vector<16x128xf32>
    %24 = arith.addf %18, %16 : vector<16x128xf32>
    %cst_7 = arith.constant 1.000000e+02 : f32
    %25 = vector.broadcast %cst_7 : f32 to vector<16x128xf32>
    %26 = arith.minimumf %24, %25 : vector<16x128xf32>
    %cst_8 = arith.constant 1.000000e+02 : f32
    %27 = vector.broadcast %cst_8 : f32 to vector<16x128xf32>
    %28 = arith.minimumf %20, %27 : vector<16x128xf32>
    %29 = arith.subf %28, %26 : vector<16x128xf32>
    %30 = arith.mulf %9, %29 : vector<16x128xf32>
    %31 = arith.addf %26, %30 : vector<16x128xf32>
    %32 = arith.mulf %23, %9 : vector<16x128xf32>
    %33 = vector.shape_cast %32 : vector<16x128xf32> to vector<2x8x128xf32>
    %cst_9 = arith.constant dense<0.000000e+00> : vector<8x128xf32>
    %34 = vector.multi_reduction <add>, %33, %cst_9 [0] : vector<2x8x128xf32> to vector<8x128xf32>
    %35 = arith.addf %3, %34 : vector<8x128xf32>
    %36 = vector.shape_cast %23 : vector<16x128xf32> to vector<2x8x128xf32>
    %cst_10 = arith.constant dense<0.000000e+00> : vector<8x128xf32>
    %37 = vector.multi_reduction <add>, %36, %cst_10 [0] : vector<2x8x128xf32> to vector<8x128xf32>
    %38 = arith.addf %3, %37 : vector<8x128xf32>
    %39 = vector.shape_cast %9 : vector<16x128xf32> to vector<2x8x128xf32>
    %cst_11 = arith.constant dense<0.000000e+00> : vector<8x128xf32>
    %40 = vector.multi_reduction <add>, %39, %cst_11 [0] : vector<2x8x128xf32> to vector<8x128xf32>
    %41 = arith.addf %3, %40 : vector<8x128xf32>
    %42 = vector.shape_cast %31 : vector<16x128xf32> to vector<2x8x128xf32>
    %cst_12 = arith.constant dense<0.000000e+00> : vector<8x128xf32>
    %43 = vector.multi_reduction <add>, %42, %cst_12 [0] : vector<2x8x128xf32> to vector<8x128xf32>
    %44 = arith.addf %3, %43 : vector<8x128xf32>
    %c1_i32 = arith.constant 1 : i32
    %c0_13 = arith.constant 0 : index
    %c0_14 = arith.constant 0 : index
    %c0_15 = arith.constant 0 : index
    %45 = vector.load %arg5[%c0_13, %c0_14, %c0_15] : memref<4x8x128xf32, #tpu.memory_space<vmem>>, vector<1x8x128xf32>
    %46 = vector.shape_cast %45 : vector<1x8x128xf32> to vector<8x128xf32>
    %47 = arith.addf %46, %35 : vector<8x128xf32>
    %c0_16 = arith.constant 0 : index
    %c0_17 = arith.constant 0 : index
    %c0_18 = arith.constant 0 : index
    %48 = vector.load %arg5[%c0_16, %c0_17, %c0_18] : memref<4x8x128xf32, #tpu.memory_space<vmem>>, vector<1x8x128xf32>
    %49 = vector.shape_cast %48 : vector<1x8x128xf32> to vector<8x128xf32>
    %50 = vector.shape_cast %47 : vector<8x128xf32> to vector<1x8x128xf32>
    tpu.vector_store %arg5[%c0_16, %c0_17, %c0_18], %50 {strides = array<i32>} : memref<4x8x128xf32, #tpu.memory_space<vmem>>, vector<1x8x128xf32>,
    %c1 = arith.constant 1 : index
    %c0_19 = arith.constant 0 : index
    %c0_20 = arith.constant 0 : index
    %51 = vector.load %arg5[%c1, %c0_19, %c0_20] : memref<4x8x128xf32, #tpu.memory_space<vmem>>, vector<1x8x128xf32>
    %52 = vector.shape_cast %51 : vector<1x8x128xf32> to vector<8x128xf32>
    %53 = arith.addf %52, %38 : vector<8x128xf32>
    %c1_21 = arith.constant 1 : index
    %c0_22 = arith.constant 0 : index
    %c0_23 = arith.constant 0 : index
    %54 = vector.load %arg5[%c1_21, %c0_22, %c0_23] : memref<4x8x128xf32, #tpu.memory_space<vmem>>, vector<1x8x128xf32>
    %55 = vector.shape_cast %54 : vector<1x8x128xf32> to vector<8x128xf32>
    %56 = vector.shape_cast %53 : vector<8x128xf32> to vector<1x8x128xf32>
    tpu.vector_store %arg5[%c1_21, %c0_22, %c0_23], %56 {strides = array<i32>} : memref<4x8x128xf32, #tpu.memory_space<vmem>>, vector<1x8x128xf32>,
    %c2 = arith.constant 2 : index
    %c0_24 = arith.constant 0 : index
    %c0_25 = arith.constant 0 : index
    %57 = vector.load %arg5[%c2, %c0_24, %c0_25] : memref<4x8x128xf32, #tpu.memory_space<vmem>>, vector<1x8x128xf32>
    %58 = vector.shape_cast %57 : vector<1x8x128xf32> to vector<8x128xf32>
    %59 = arith.addf %58, %41 : vector<8x128xf32>
    %c2_26 = arith.constant 2 : index
    %c0_27 = arith.constant 0 : index
    %c0_28 = arith.constant 0 : index
    %60 = vector.load %arg5[%c2_26, %c0_27, %c0_28] : memref<4x8x128xf32, #tpu.memory_space<vmem>>, vector<1x8x128xf32>
    %61 = vector.shape_cast %60 : vector<1x8x128xf32> to vector<8x128xf32>
    %62 = vector.shape_cast %59 : vector<8x128xf32> to vector<1x8x128xf32>
    tpu.vector_store %arg5[%c2_26, %c0_27, %c0_28], %62 {strides = array<i32>} : memref<4x8x128xf32, #tpu.memory_space<vmem>>, vector<1x8x128xf32>,
    %c3 = arith.constant 3 : index
    %c0_29 = arith.constant 0 : index
    %c0_30 = arith.constant 0 : index
    %63 = vector.load %arg5[%c3, %c0_29, %c0_30] : memref<4x8x128xf32, #tpu.memory_space<vmem>>, vector<1x8x128xf32>
    %64 = vector.shape_cast %63 : vector<1x8x128xf32> to vector<8x128xf32>
    %65 = arith.addf %64, %44 : vector<8x128xf32>
    %c3_31 = arith.constant 3 : index
    %c0_32 = arith.constant 0 : index
    %c0_33 = arith.constant 0 : index
    %66 = vector.load %arg5[%c3_31, %c0_32, %c0_33] : memref<4x8x128xf32, #tpu.memory_space<vmem>>, vector<1x8x128xf32>
    %67 = vector.shape_cast %66 : vector<1x8x128xf32> to vector<8x128xf32>
    %68 = vector.shape_cast %65 : vector<8x128xf32> to vector<1x8x128xf32>
    tpu.vector_store %arg5[%c3_31, %c0_32, %c0_33], %68 {strides = array<i32>} : memref<4x8x128xf32, #tpu.memory_space<vmem>>, vector<1x8x128xf32>,
    %c0_i32_34 = arith.constant 0 : i32
    %69 = arith.cmpi eq, %arg1, %c0_i32_34 : i32
    %70 = arith.extui %69 : i1 to i32
    %c0_i32_35 = arith.constant 0 : i32
    %71 = arith.cmpi ne, %70, %c0_i32_35 : i32
    scf.if %71 {
      %c0_36 = arith.constant 0 : index
      %c0_37 = arith.constant 0 : index
      %c0_38 = arith.constant 0 : index
      %72 = vector.load %arg5[%c0_36, %c0_37, %c0_38] : memref<4x8x128xf32, #tpu.memory_space<vmem>>, vector<1x8x128xf32>
      %73 = vector.shape_cast %72 : vector<1x8x128xf32> to vector<8x128xf32>
      %74 = vector.shape_cast %73 : vector<8x128xf32> to vector<1x8x128xf32>
      %cst_39 = arith.constant dense<0.000000e+00> : vector<1xf32>
      %75 = vector.multi_reduction <add>, %74, %cst_39 [1, 2] : vector<1x8x128xf32> to vector<1xf32>
      %76 = vector.shape_cast %75 : vector<1xf32> to vector<1x1x1xf32>
      %77 = vector.extract %76[0, 0, 0] : f32 from vector<1x1x1xf32>
      %c0_40 = arith.constant 0 : index
      %c0_41 = arith.constant 0 : index
      %78 = memref.load %arg4[%c0_40, %c0_41] : memref<1x4xf32, #tpu.memory_space<smem>>
      memref.store %77, %arg4[%c0_40, %c0_41] : memref<1x4xf32, #tpu.memory_space<smem>>
      %c1_42 = arith.constant 1 : index
      %c0_43 = arith.constant 0 : index
      %c0_44 = arith.constant 0 : index
      %79 = vector.load %arg5[%c1_42, %c0_43, %c0_44] : memref<4x8x128xf32, #tpu.memory_space<vmem>>, vector<1x8x128xf32>
      %80 = vector.shape_cast %79 : vector<1x8x128xf32> to vector<8x128xf32>
      %81 = vector.shape_cast %80 : vector<8x128xf32> to vector<1x8x128xf32>
      %cst_45 = arith.constant dense<0.000000e+00> : vector<1xf32>
      %82 = vector.multi_reduction <add>, %81, %cst_45 [1, 2] : vector<1x8x128xf32> to vector<1xf32>
      %83 = vector.shape_cast %82 : vector<1xf32> to vector<1x1x1xf32>
      %84 = vector.extract %83[0, 0, 0] : f32 from vector<1x1x1xf32>
      %c0_46 = arith.constant 0 : index
      %c1_47 = arith.constant 1 : index
      %85 = memref.load %arg4[%c0_46, %c1_47] : memref<1x4xf32, #tpu.memory_space<smem>>
      memref.store %84, %arg4[%c0_46, %c1_47] : memref<1x4xf32, #tpu.memory_space<smem>>
      %c2_48 = arith.constant 2 : index
      %c0_49 = arith.constant 0 : index
      %c0_50 = arith.constant 0 : index
      %86 = vector.load %arg5[%c2_48, %c0_49, %c0_50] : memref<4x8x128xf32, #tpu.memory_space<vmem>>, vector<1x8x128xf32>
      %87 = vector.shape_cast %86 : vector<1x8x128xf32> to vector<8x128xf32>
      %88 = vector.shape_cast %87 : vector<8x128xf32> to vector<1x8x128xf32>
      %cst_51 = arith.constant dense<0.000000e+00> : vector<1xf32>
      %89 = vector.multi_reduction <add>, %88, %cst_51 [1, 2] : vector<1x8x128xf32> to vector<1xf32>
      %90 = vector.shape_cast %89 : vector<1xf32> to vector<1x1x1xf32>
      %91 = vector.extract %90[0, 0, 0] : f32 from vector<1x1x1xf32>
      %c0_52 = arith.constant 0 : index
      %c2_53 = arith.constant 2 : index
      %92 = memref.load %arg4[%c0_52, %c2_53] : memref<1x4xf32, #tpu.memory_space<smem>>
      memref.store %91, %arg4[%c0_52, %c2_53] : memref<1x4xf32, #tpu.memory_space<smem>>
      %c3_54 = arith.constant 3 : index
      %c0_55 = arith.constant 0 : index
      %c0_56 = arith.constant 0 : index
      %93 = vector.load %arg5[%c3_54, %c0_55, %c0_56] : memref<4x8x128xf32, #tpu.memory_space<vmem>>, vector<1x8x128xf32>
      %94 = vector.shape_cast %93 : vector<1x8x128xf32> to vector<8x128xf32>
      %95 = vector.shape_cast %94 : vector<8x128xf32> to vector<1x8x128xf32>
      %cst_57 = arith.constant dense<0.000000e+00> : vector<1xf32>
      %96 = vector.multi_reduction <add>, %95, %cst_57 [1, 2] : vector<1x8x128xf32> to vector<1xf32>
      %97 = vector.shape_cast %96 : vector<1xf32> to vector<1x1x1xf32>
      %98 = vector.extract %97[0, 0, 0] : f32 from vector<1x1x1xf32>
      %c0_58 = arith.constant 0 : index
      %c3_59 = arith.constant 3 : index
      %99 = memref.load %arg4[%c0_58, %c3_59] : memref<1x4xf32, #tpu.memory_space<smem>>
      memref.store %98, %arg4[%c0_58, %c3_59] : memref<1x4xf32, #tpu.memory_space<smem>>
    } else {
    }
    return
  }
  func.func @transform_0(%arg0: i32, %arg1: i32) -> (i32, i32) {
    %c1_i32 = arith.constant 1 : i32
    %0 = arith.muli %arg0, %c1_i32 : i32
    %1 = arith.addi %0, %arg1 : i32
    %c0_i32 = arith.constant 0 : i32
    %2 = arith.minsi %1, %c0_i32 : i32
    %c0_i32_0 = arith.constant 0 : i32
    %c0_i32_1 = arith.constant 0 : i32
    return %2, %c0_i32_0 : i32, i32
  }
  func.func @transform_1(%arg0: i32, %arg1: i32) -> (i32, i32) {
    %c1_i32 = arith.constant 1 : i32
    %0 = arith.muli %arg0, %c1_i32 : i32
    %1 = arith.addi %0, %arg1 : i32
    %c0_i32 = arith.constant 0 : i32
    %2 = arith.minsi %1, %c0_i32 : i32
    %c0_i32_0 = arith.constant 0 : i32
    %c0_i32_1 = arith.constant 0 : i32
    return %2, %c0_i32_0 : i32, i32
  }
  func.func @transform_2(%arg0: i32, %arg1: i32) -> (i32, i32) {
    %c0_i32 = arith.constant 0 : i32
    %c0_i32_0 = arith.constant 0 : i32
    return %arg0, %c0_i32 : i32, i32
  }
}

</mosaic_0001>

<llo_original>
// kernel: tpu_custom_call.1
$region0: #{tpu_custom_call.1}
  #allocation0 [shape = 'u32[]', space=smem, size = 0x4, offset = 0x4, fixed_abs, tag = 'smem constant byte address 0x4 - core index']
  #allocation1 [shape = 'u32[144,128]{1,0:T(1,128)}', space=vmem, size = 0x12000, scoped, tag = 'internal scratch']
  #allocation2 [shape = 'f32[4,8,128]{2,1,0:T(8,128)}', space=vmem, size = 0x4000, scoped, tag = 'scratch operand']
  %s0 = inlined_call_operand.hbm [shape: f32[16,128], index: 0, kind: input, shape index: {}]
  %s1 = inlined_call_operand.hbm [shape: f32[16,128], index: 1, kind: input, shape index: {}]
  %s2 = inlined_call_operand.hbm [shape: f32[1,4], index: 2, kind: output, shape index: {}]
  %s3 = sld [smem:[#allocation0]]
  $region34: #{tpu_custom_call.1} parent=0
    _
  %s5 = ssub.s32 1, %s3
  %s6 = scalar_select 0, %s5, %s3
  $region1: #{tpu_custom_call.1} parent=0
    #allocation3 [shape = 'u8[8192]{0}', space=vmem, size = 0x2000, scoped, tag = 'input window, operand 0, single buffered']
    #allocation4 [shape = 's32[1]{0}', space=sflag, size = 0x4, scoped, tag = 'scoped memory for tpu_custom_call.1']
    #allocation5 [shape = 's32[1]{0}', space=sflag, size = 0x4, scoped, tag = 'scoped memory for tpu_custom_call.1']
    #allocation6 [shape = 'u8[8192]{0}', space=vmem, size = 0x2000, scoped, tag = 'input window, operand 1, single buffered']
    #allocation7 [shape = 's32[1]{0}', space=sflag, size = 0x4, scoped, tag = 'scoped memory for tpu_custom_call.1']
    #allocation8 [shape = 'u8[512]{0}', space=smem, size = 0x200, scoped, tag = 'output window, operand 0, single buffered']
    %7 = vsyncpa [#allocation4], 0
    %8 = vsyncpa [#allocation7], 0
    %9 = vsyncpa [#allocation5], 0
    // Predicated region
    $region2: #{tpu_custom_call.1} parent=1 // pred_check
      _
    $region3: #{tpu_custom_call.1} parent=1 // pred_check_branch
      %11 = sbr.rel (0) target = $region5
    $region4: #{tpu_custom_call.1} parent=1 // pred_region
      %s12 = sadd.s32 0, 0
      %p13 = scmp.lt.s32.totalorder %s12, 0
      %s14 = scalar_select %p13, %s12, 0
      %s15 = smul.u32 2, %s14
      %s17 = ssub.s32 256, 256
      %18 = vsyncadd [#allocation4], %s17
      %s19 = smul.addr %s15, 128
      %s20 = scalar_lea.hbm %s0, %s19
      %s21 = sshll.u32 [#allocation3], 4
      %s22 = int_to_ptr.vmem [resolvable:$true] %s21
      %27 = dma.hbm_to_vmem [thread:$0]  %s20, 256, %s22, [#allocation4], 128, 128, 8
    $region5: #{tpu_custom_call.1} parent=1 // pred_fallthru
      _
    // Predicated region
    $region6: #{tpu_custom_call.1} parent=1 // pred_check
      _
    $region7: #{tpu_custom_call.1} parent=1 // pred_check_branch
      %29 = sbr.rel (0) target = $region9
    $region8: #{tpu_custom_call.1} parent=1 // pred_region
      %s30 = sadd.s32 0, 0
      %p31 = scmp.lt.s32.totalorder %s30, 0
      %s32 = scalar_select %p31, %s30, 0
      %s33 = smul.u32 2, %s32
      %s35 = ssub.s32 256, 256
      %36 = vsyncadd [#allocation7], %s35
      %s37 = smul.addr %s33, 128
      %s38 = scalar_lea.hbm %s1, %s37
      %s39 = sshll.u32 [#allocation6], 4
      %s40 = int_to_ptr.vmem [resolvable:$true] %s39
      %45 = dma.hbm_to_vmem [thread:$0]  %s38, 256, %s40, [#allocation7], 128, 128, 8
    $region9: #{tpu_custom_call.1} parent=1 // pred_fallthru
      _
    // Predicated region
    $region10: #{tpu_custom_call.1} parent=1 // pred_check
      _
    $region11: #{tpu_custom_call.1} parent=1 // pred_check_branch
      %47 = sbr.rel (0) target = $region13
    $region12: #{tpu_custom_call.1} parent=1 // pred_region
      %48 = dma.done [#allocation4], 256
    $region13: #{tpu_custom_call.1} parent=1 // pred_fallthru
      _
    // Predicated region
    $region14: #{tpu_custom_call.1} parent=1 // pred_check
      _
    $region15: #{tpu_custom_call.1} parent=1 // pred_check_branch
      %50 = sbr.rel (0) target = $region17
    $region16: #{tpu_custom_call.1} parent=1 // pred_region
      %51 = dma.done [#allocation7], 256
    $region17: #{tpu_custom_call.1} parent=1 // pred_fallthru
      _
    %s52 = sadd.s32 0, 0
    %p53 = scmp.lt.s32.totalorder %s52, 0
    %s54 = scalar_select %p53, %s52, 0
    %s55 = smul.u32 2, %s54
    %s56 = sadd.s32 0, 0
    %p57 = scmp.lt.s32.totalorder %s56, 0
    %s58 = scalar_select %p57, %s56, 0
    %s59 = smul.u32 2, %s58
    %p60 = scmp.eq.s32.totalorder 0, 0
    // Predicated region
    $region18: #{tpu_custom_call.1} parent=1 // pred_check
      %p61 = pneg %p60
    $region19: #{tpu_custom_call.1} parent=1 // pred_check_branch
      %63 = sbr.rel (%p61) target = $region21
    $region20: #{tpu_custom_call.1} parent=1 // pred_region
      %64 = vst [vmem:[#allocation2] sm:$0xff] 0.0
      %65 = vst [vmem:[#allocation2 + $0x8] sm:$0xff] 0.0
      %66 = vst [vmem:[#allocation2 + $0x10] sm:$0xff] 0.0
      %67 = vst [vmem:[#allocation2 + $0x18] sm:$0xff] 0.0
    $region21: #{tpu_custom_call.1} parent=1 // pred_fallthru
      _
    %v68 = vld [vmem:[#allocation3] sm:$0xff]
    %v69 = vld [vmem:[#allocation3 + $0x8] sm:$0xff]
    %v70 = vld [vmem:[#allocation6] sm:$0xff]
    %v71 = vld [vmem:[#allocation6 + $0x8] sm:$0xff]
    %v72 = vand.u32 2147483647, %v68
    %v73 = vand.u32 2147483647, %v69
    %v74 = vsub.f32 0.0, %v72
    %v75 = vsub.f32 0.0, %v73
    %v76 = vmul.f32 %v74, 1.442695
    %v77 = vpow.pop %v76
    %v78 = vmul.f32 %v75, 1.442695
    %v79 = vpow.pop %v78
    %v80 = vadd.f32 %v77, 1.0
    %v81 = vadd.f32 %v79, 1.0
    %v82 = vlog2.pop %v80
    %v83 = vmul.f32 %v82, 0.6931472
    %v84 = vlog2.pop %v81
    %v85 = vmul.f32 %v84, 0.6931472
    %v86 = vmax.f32 %v68, 0.0
    %v87 = vmax.f32 %v69, 0.0
    %v88 = vsub.f32 %v86, %v68
    %v89 = vsub.f32 %v87, %v69
    %v90 = vadd.f32 %v88, %v83
    %v91 = vadd.f32 %v89, %v85
    %v92 = vsub.f32 0.0, %v90
    %v93 = vsub.f32 0.0, %v91
    %v94 = vmul.f32 %v92, 1.442695
    %v95 = vpow.pop %v94
    %v96 = vmul.f32 %v93, 1.442695
    %v97 = vpow.pop %v96
    %v98 = vadd.f32 %v86, %v83
    %v99 = vadd.f32 %v87, %v85
    %v100 = vmin.f32 %v98, 100.0
    %v101 = vmin.f32 %v99, 100.0
    %v102 = vmin.f32 %v90, 100.0
    %v103 = vmin.f32 %v91, 100.0
    %v104 = vsub.f32 %v102, %v100
    %v105 = vsub.f32 %v103, %v101
    %v106 = vmul.f32 %v70, %v104
    %v107 = vmul.f32 %v71, %v105
    %v108 = vadd.f32 %v100, %v106
    %v109 = vadd.f32 %v101, %v107
    %v110 = vmul.f32 %v95, %v70
    %v111 = vmul.f32 %v97, %v71
    %v112 = vadd.f32 %v110, %v111
    %v113 = vadd.f32 %v112, 0.0
    %v114 = vadd.f32 %v95, %v97
    %v115 = vadd.f32 %v114, 0.0
    %v116 = vadd.f32 %v70, %v71
    %v117 = vadd.f32 %v116, 0.0
    %v118 = vadd.f32 %v108, %v109
    %v119 = vadd.f32 %v118, 0.0
    %v120 = vld [vmem:[#allocation2] sm:$0xff]
    %v121 = vadd.f32 %v120, %v113
    %122 = vst [vmem:[#allocation2] sm:$0xff] %v121
    %s123 = scalar_lea.vmem [#allocation2], 8
    %v124 = vld [vmem:[%s123] sm:$0xff]
    %v125 = vadd.f32 %v124, %v115
    %126 = vst [vmem:[%s123] sm:$0xff] %v125
    %s127 = scalar_lea.vmem [#allocation2], 16
    %v128 = vld [vmem:[%s127] sm:$0xff]
    %v129 = vadd.f32 %v128, %v117
    %130 = vst [vmem:[%s127] sm:$0xff] %v129
    %s131 = scalar_lea.vmem [#allocation2], 24
    %v132 = vld [vmem:[%s131] sm:$0xff]
    %v133 = vadd.f32 %v132, %v119
    %134 = vst [vmem:[%s131] sm:$0xff] %v133
    // Predicated region
    $region22: #{tpu_custom_call.1} parent=1 // pred_check
      %p135 = pneg %p60
    $region23: #{tpu_custom_call.1} parent=1 // pred_check_branch
      %137 = sbr.rel (%p135) target = $region25
    $region24: #{tpu_custom_call.1} parent=1 // pred_region
      %v138 = vld [vmem:[#allocation2] sm:$0xff]
      %139 = vadd.xlane.f32.xlu0 %v138
      %v140 = vpop.xlane.xlu0 %139
      %v141 = vrot.slane %v140, 4
      %v142 = vadd.f32 %v140, %v141
      %v143 = vrot.slane %v142, 2
      %v144 = vadd.f32 %v142, %v143
      %v145 = vrot.slane %v144, 1
      %v146 = vadd.f32 %v144, %v145
      %s147 = vtos %v146
      %s148 = scalar_lea.smem [#allocation8], 0
      %149 = sst [smem:[%s148]] %s147
      %v150 = vld [vmem:[%s123] sm:$0xff]
      %151 = vadd.xlane.f32.xlu0 %v150
      %v152 = vpop.xlane.xlu0 %151
      %v153 = vrot.slane %v152, 4
      %v154 = vadd.f32 %v152, %v153
      %v155 = vrot.slane %v154, 2
      %v156 = vadd.f32 %v154, %v155
      %v157 = vrot.slane %v156, 1
      %v158 = vadd.f32 %v156, %v157
      %s159 = vtos %v158
      %s160 = scalar_lea.smem [#allocation8], 1
      %161 = sst [smem:[%s160]] %s159
      %v162 = vld [vmem:[%s127] sm:$0xff]
      %163 = vadd.xlane.f32.xlu0 %v162
      %v164 = vpop.xlane.xlu0 %163
      %v165 = vrot.slane %v164, 4
      %v166 = vadd.f32 %v164, %v165
      %v167 = vrot.slane %v166, 2
      %v168 = vadd.f32 %v166, %v167
      %v169 = vrot.slane %v168, 1
      %v170 = vadd.f32 %v168, %v169
      %s171 = vtos %v170
      %s172 = scalar_lea.smem [#allocation8], 2
      %173 = sst [smem:[%s172]] %s171
      %v174 = vld [vmem:[%s131] sm:$0xff]
      %175 = vadd.xlane.f32.xlu0 %v174
      %v176 = vpop.xlane.xlu0 %175
      %v177 = vrot.slane %v176, 4
      %v178 = vadd.f32 %v176, %v177
      %v179 = vrot.slane %v178, 2
      %v180 = vadd.f32 %v178, %v179
      %v181 = vrot.slane %v180, 1
      %v182 = vadd.f32 %v180, %v181
      %s183 = vtos %v182
      %s184 = scalar_lea.smem [#allocation8], 3
      %185 = sst [smem:[%s184]] %s183
    $region25: #{tpu_custom_call.1} parent=1 // pred_fallthru
      _
    // Predicated region
    $region26: #{tpu_custom_call.1} parent=1 // pred_check
      _
    $region27: #{tpu_custom_call.1} parent=1 // pred_check_branch
      %187 = sbr.rel (0) target = $region29
    $region28: #{tpu_custom_call.1} parent=1 // pred_region
      %s189 = ssub.s32 16, 16
      %190 = vsyncadd [#allocation5], %s189
      %193 = dma.smem_to_hbm [#allocation8], 16, %s2, [#allocation5]
    $region29: #{tpu_custom_call.1} parent=1 // pred_fallthru
      _
    // Predicated region
    $region30: #{tpu_custom_call.1} parent=1 // pred_check
      _
    $region31: #{tpu_custom_call.1} parent=1 // pred_check_branch
      %195 = sbr.rel (0) target = $region33
    $region32: #{tpu_custom_call.1} parent=1 // pred_region
      %196 = dma.done [#allocation5], 16
    $region33: #{tpu_custom_call.1} parent=1 // pred_fallthru
      _
    %197 = sfence
    %198 = vsyncpa [#allocation4], 1
    %199 = vsyncpa [#allocation7], 1
    %200 = vsyncpa [#allocation5], 1

</llo_original>
